<compile_context>
chip_gen: v5e
topology: v5e:2x2
jax: 0.10.0
libtpu: 0.0.40
codegen_flags: <defaults>
</compile_context>

<pallas_src>
import math

import jax
import jax.numpy as jnp
from jax.experimental import pallas as pl
from jax.experimental.pallas import tpu as pltpu


# ---------------------------------------------------------------------------
# Small helpers
# ---------------------------------------------------------------------------
def _round_up(x, m):
    return -(-x // m) * m


def _padded_bytes(shape, itemsize):
    """VMEM footprint of one buffer: last two dims pad to (8, 128) tiles."""
    shape = tuple(int(d) for d in shape)
    if len(shape) == 1:
        shape = (1,) + shape
    lead = 1
    for d in shape[:-2]:
        lead *= d
    rows = _round_up(shape[-2], 8)
    lanes = _round_up(shape[-1], 128)
    return lead * rows * lanes * itemsize


def _mish(h):
    # mish(h) = h * tanh(softplus(h)) = h * (t^2 - 1) / (t^2 + 1),  t = 1 + e^h
    # single EUP transcendental; h > 20 linear guard keeps f32 parity.
    t = 1.0 + jnp.exp(jnp.minimum(h, 20.0))
    t2 = t * t
    return jnp.where(h > 20.0, h, h * (t2 - 1.0) / (t2 + 1.0))


# ---------------------------------------------------------------------------
# Kernels
# ---------------------------------------------------------------------------
def _lspe_kernel(pe_ref, w1_ref, b1_ref, w2_ref, b2_ref, lspe_ref):
    """lspe = NoisyFactorizedLinear(Mish(Linear(pe))) for one (ts, D) slab."""
    pe = pe_ref[...].astype(jnp.float32)
    h = jnp.dot(pe, w1_ref[...], preferred_element_type=jnp.float32) + b1_ref[...]
    lspe_ref[...] = (
        jnp.dot(_mish(h), w2_ref[...], preferred_element_type=jnp.float32)
        + b2_ref[...]
    )


def _add_kernel(x_ref, lspe_ref, o_ref):
    """Lane-dense broadcast add; lspe stays f32, add in f32, cast on store."""
    o_ref[...] = (x_ref[...].astype(jnp.float32) + lspe_ref[...]).astype(o_ref.dtype)


def _fused_kernel(x_ref, pe_ref, w1_ref, b1_ref, w2_ref, b2_ref, o_ref):
    """Small-problem fast path: LSPE + broadcast add in one launch (all-VMEM)."""
    pe = pe_ref[...].astype(jnp.float32)
    h = jnp.dot(pe, w1_ref[...], preferred_element_type=jnp.float32) + b1_ref[...]
    lspe = (jnp.dot(_mish(h), w2_ref[...], preferred_element_type=jnp.float32)
            + b2_ref[...])
    o_ref[...] = (x_ref[...].astype(jnp.float32) + lspe[None, :, :]).astype(o_ref.dtype)


# ---------------------------------------------------------------------------
# Prologue (runs once per forward, off the hot path): lspe (S, D) in f32
# ---------------------------------------------------------------------------
def compute_lspe(pe, w1, b1, w2_eff, b2_eff):
    S, D = pe.shape
    ts = S if S <= 2048 else 2048                      # multiple of 8, or full dim
    grid = (pl.cdiv(S, ts),)

    vmem = int(min(
        32 << 20,
        max(4 << 20,
            2 * 2 * _padded_bytes((ts, D), 4)          # pe + lspe blocks, 2x buffered
            + 2 * 2 * _padded_bytes((D, D), 4)         # w1, w2
            + 2 * 2 * _padded_bytes((1, D), 4)         # b1, b2
            + (2 << 20))))

    return pl.pallas_call(
        _lspe_kernel,
        out_shape=jax.ShapeDtypeStruct((S, D), jnp.float32),
        grid_spec=pltpu.PrefetchScalarGridSpec(
            num_scalar_prefetch=0,
            grid=grid,
            in_specs=[
                pl.BlockSpec((ts, D), lambda i: (i, 0)),   # pe slab
                pl.BlockSpec((D, D), lambda i: (0, 0)),    # w1 (resident)
                pl.BlockSpec((1, D), lambda i: (0, 0)),    # b1
                pl.BlockSpec((D, D), lambda i: (0, 0)),    # w2_eff
                pl.BlockSpec((1, D), lambda i: (0, 0)),    # b2_eff
            ],
            out_specs=pl.BlockSpec((ts, D), lambda i: (i, 0)),
        ),
        compiler_params=pltpu.CompilerParams(
            dimension_semantics=("parallel",),
            vmem_limit_bytes=vmem,
        ),
    )(pe, w1, b1, w2_eff, b2_eff)


# ---------------------------------------------------------------------------
# Hot path: lane-dense streamed broadcast add  o = x + lspe
# ---------------------------------------------------------------------------
def _stream_add(x, lspe, *, target_block_bytes):
    B, S, D = x.shape
    total = S * D
    itemsize = jnp.dtype(x.dtype).itemsize

    # Sublane repacking: with B < 8 a (B, total) block wastes 8/B of every vreg
    # and VMEM tile; view x as (B, 8, total/8) and lspe as (1, 8, total/8).
    repack = (B < 8) and (total % (8 * 128) == 0)
    if repack:
        L = total // 8
        x_v = x.reshape(B, 8, L)
        lspe_v = lspe.reshape(1, 8, L)                 # f32
        x_rows = B * 8
        blk = lambda lt: (B, 8, lt)
        lspe_blk = lambda lt: (1, 8, lt)
        idx = lambda i: (0, 0, i)
    else:
        L = total
        x_v = x.reshape(B, L)
        lspe_v = lspe.reshape(1, L)                    # f32
        x_rows = _round_up(B, 8)                       # sublane padding
        blk = lambda lt: (B, lt)
        lspe_blk = lambda lt: (1, lt)
        idx = lambda i: (0, i)

    # Lane-tile selection: largest multiple of 128 whose x block fits the target.
    # cdiv grid (partial last block allowed); prefer an even step count so v7x's
    # two TensorCores stay balanced when the axis is sharded as "parallel".
    x_bytes_per_lane = x_rows * itemsize
    if L <= 128:
        lane_tile, steps = L, 1
    else:
        max_lanes = max(128, (target_block_bytes // x_bytes_per_lane) // 128 * 128)
        steps = pl.cdiv(L, min(L, max_lanes))
        if steps > 1 and steps % 2 == 1:
            steps += 1
        lane_tile = min(L, _round_up(pl.cdiv(L, steps), 128))
        steps = pl.cdiv(L, lane_tile)

    # VMEM budget WITH sublane padding: x + out + lspe(8-row padded) blocks,
    # double buffered, plus slack; capped below every generation's scoped VMEM.
    bytes_per_lane_all = 2 * x_rows * itemsize + 8 * 4
    vmem = int(min(32 << 20,
                   max(4 << 20, 2 * lane_tile * bytes_per_lane_all + (4 << 20))))

    out_v = pl.pallas_call(
        _add_kernel,
        out_shape=jax.ShapeDtypeStruct(x_v.shape, x.dtype),
        grid_spec=pltpu.PrefetchScalarGridSpec(
            num_scalar_prefetch=0,
            grid=(steps,),
            in_specs=[
                pl.BlockSpec(blk(lane_tile), idx),        # x   (lane-dense)
                pl.BlockSpec(lspe_blk(lane_tile), idx),   # lspe row(s), f32
            ],
            out_specs=pl.BlockSpec(blk(lane_tile), idx),
        ),
        compiler_params=pltpu.CompilerParams(
            dimension_semantics=("parallel",),
            vmem_limit_bytes=vmem,
        ),
    )(x_v, lspe_v)

    return out_v.reshape(B, S, D)


# ---------------------------------------------------------------------------
# Forward
# ---------------------------------------------------------------------------
def positional_encoding_forward(x, pe, w1, b1, w2_eff, b2_eff,
                                *, target_block_bytes=4 << 20,
                                fused_threshold_bytes=2 << 20):
    B, S, D = x.shape
    assert pe.shape == (S, D)
    itemsize = jnp.dtype(x.dtype).itemsize

    # --- small-problem fast path: one launch, everything VMEM-resident -------
    fused_bytes = (2 * _padded_bytes((B, S, D), itemsize)     # x + out
                   + 2 * _padded_bytes((S, D), 4)             # pe + lspe value
                   + 2 * _padded_bytes((D, D), 4)             # w1, w2
                   + 2 * _padded_bytes((1, D), 4))            # b1, b2
    if fused_bytes <= fused_threshold_bytes:
        vmem = int(min(32 << 20, max(4 << 20, 2 * fused_bytes + (1 << 20))))
        return pl.pallas_call(
            _fused_kernel,
            out_shape=jax.ShapeDtypeStruct((B, S, D), x.dtype),
            compiler_params=pltpu.CompilerParams(vmem_limit_bytes=vmem),
        )(x, pe, w1, b1, w2_eff, b2_eff)

    # --- large path: one-shot LSPE prologue + lane-dense streamed add --------
    lspe = compute_lspe(pe, w1, b1, w2_eff, b2_eff)           # (S, D) f32
    return _stream_add(x, lspe, target_block_bytes=target_block_bytes)


# ---------------------------------------------------------------------------
# Parameter / buffer construction (deterministic, plain-JAX "glue" = __init__).
# ---------------------------------------------------------------------------
def make_sinusoidal_pe(max_length, d_model, dtype=jnp.float32):
    k = jnp.arange(max_length, dtype=jnp.float32)[:, None]                   # (L, 1)
    div_term = jnp.exp(jnp.arange(0, d_model, 2, dtype=jnp.float32)
                       * (-(math.log(10000.0) / d_model)))                   # (D/2,)
    pe_sin = jnp.sin(k * div_term)                                           # (L, D/2)
    pe_cos = jnp.cos(k * div_term)                                           # (L, D/2)
    # interleave: even columns = sin, odd columns = cos
    pe = jnp.stack([pe_sin, pe_cos], axis=-1).reshape(max_length, d_model)
    return pe.astype(dtype)


def make_params(key, d_model, sigma_zero=0.4):
    ks = jax.random.split(key, 8)
    bound = 1.0 / math.sqrt(d_model)

    # Linear(d_model, d_model)  -- stored as (in, out)
    w1 = jax.random.uniform(ks[0], (d_model, d_model), jnp.float32, -bound, bound)
    b1 = jax.random.uniform(ks[1], (1, d_model), jnp.float32, -bound, bound)

    # NoisyFactorizedLinear(d_model, d_model)
    w2 = jax.random.uniform(ks[2], (d_model, d_model), jnp.float32, -bound, bound)
    b2 = jax.random.uniform(ks[3], (1, d_model), jnp.float32, -bound, bound)
    sigma_init = sigma_zero / math.sqrt(d_model)
    sigma_w = jnp.full((d_model, d_model), sigma_init, jnp.float32)
    sigma_b = jnp.full((1, d_model), sigma_init, jnp.float32)

    # factorized noise: eps_in (1, in), eps_out (out, 1); f(x) = sign(x)*sqrt(|x|)
    eps_in = jax.random.normal(ks[4], (1, d_model), jnp.float32)
    eps_out = jax.random.normal(ks[5], (d_model, 1), jnp.float32)
    f = lambda t: jnp.sign(t) * jnp.sqrt(jnp.abs(t))
    eps_in, eps_out = f(eps_in), f(eps_out)

    # effective (in, out) weight: PyTorch does W(out,in) + sigma * (eps_out @ eps_in)
    noise_out_in = eps_out @ eps_in                       # (out, in)
    w2_eff = w2 + sigma_w * noise_out_in.T                # (in, out)
    b2_eff = b2 + sigma_b * eps_out.reshape(1, d_model)   # (1, out)
    # TODO(synk): PyTorch resamples eps every training-mode forward; here noise is
    # frozen into w2_eff/b2_eff (eval semantics).

    return w1, b1, w2_eff, b2_eff


# ---------------------------------------------------------------------------
# Pure-JAX reference for sanity checks.
# ---------------------------------------------------------------------------
def reference_forward(x, pe, w1, b1, w2_eff, b2_eff):
    h = pe @ w1 + b1
    h = h * jnp.tanh(jax.nn.softplus(h))          # Mish
    lspe = h @ w2_eff + b2_eff
    return x + lspe[None, :, :]


if __name__ == "__main__":
    def run_case(B, S, D, tol):
        key = jax.random.PRNGKey(0)
        k_x, k_p = jax.random.split(key)
        x = jax.random.normal(k_x, (B, S, D), jnp.float32)
        pe = make_sinusoidal_pe(5000, D)[:S]               # pe[:, :x.size(1)]
        w1, b1, w2_eff, b2_eff = make_params(k_p, D)
        out = jax.block_until_ready(
            positional_encoding_forward(x, pe, w1, b1, w2_eff, b2_eff))
        ref = reference_forward(x, pe, w1, b1, w2_eff, b2_eff)
        assert out.shape == (B, S, D)
        err = float(jnp.max(jnp.abs(out - ref)))
        assert jnp.allclose(out, ref, atol=tol, rtol=tol), \
            f"mismatch (B={B}, S={S}, D={D}): max abs err {err}"

    # 1) small-problem fused fast path (module's typical tiny shape)
    run_case(2, 128, 32, 1e-5)
    # 2) streamed path, sublane-repacked layout (B < 8)
    run_case(2, 512, 256, 2e-4)
    # 3) streamed path, plain (B, S*D) layout (B >= 8)
    run_case(8, 256, 256, 2e-4)

    print("KERNEL_OK")
</pallas_src>

<mosaic_0001>
module attributes {stable_mosaic.version = 11 : i64} {
  func.func @_fused_kernel(%arg0: memref<2x128x32xf32, #tpu.memory_space<vmem>>, %arg1: memref<128x32xf32, #tpu.memory_space<vmem>>, %arg2: memref<32x32xf32, #tpu.memory_space<vmem>>, %arg3: memref<1x32xf32, #tpu.memory_space<vmem>>, %arg4: memref<32x32xf32, #tpu.memory_space<vmem>>, %arg5: memref<1x32xf32, #tpu.memory_space<vmem>>, %arg6: memref<2x128x32xf32, #tpu.memory_space<vmem>>) attributes {dimension_semantics = [], scalar_prefetch = 0 : i64, scratch_operands = 0 : i64, tpu.core_type = #tpu.core_type<tc>} {
    %c0 = arith.constant 0 : index
    %c0_0 = arith.constant 0 : index
    %0 = vector.load %arg1[%c0, %c0_0] : memref<128x32xf32, #tpu.memory_space<vmem>>, vector<128x32xf32>
    %c0_1 = arith.constant 0 : index
    %c0_2 = arith.constant 0 : index
    %1 = vector.load %arg2[%c0_1, %c0_2] : memref<32x32xf32, #tpu.memory_space<vmem>>, vector<32x32xf32>
    %cst = arith.constant dense<0.000000e+00> : vector<128x32xf32>
    %2 = tpu.matmul %0, %1, %cst {dimension_numbers = #tpu.dot_dimension_numbers<[1], [0], [0], [1], [0, 0, 1, 1], [], []>} : vector<128x32xf32>, vector<32x32xf32>, vector<128x32xf32> -> vector<128x32xf32>
    %c0_3 = arith.constant 0 : index
    %c0_4 = arith.constant 0 : index
    %3 = vector.load %arg3[%c0_3, %c0_4] : memref<1x32xf32, #tpu.memory_space<vmem>>, vector<1x32xf32>
    %4 = vector.broadcast %3 : vector<1x32xf32> to vector<128x32xf32>
    %5 = arith.addf %2, %4 : vector<128x32xf32>
    %cst_5 = arith.constant 2.000000e+01 : f32
    %6 = vector.broadcast %cst_5 : f32 to vector<128x32xf32>
    %7 = arith.minimumf %5, %6 : vector<128x32xf32>
    %8 = math.exp %7 : vector<128x32xf32>
    %cst_6 = arith.constant 1.000000e+00 : f32
    %9 = vector.broadcast %cst_6 : f32 to vector<128x32xf32>
    %10 = arith.addf %9, %8 : vector<128x32xf32>
    %11 = arith.mulf %10, %10 : vector<128x32xf32>
    %cst_7 = arith.constant 2.000000e+01 : f32
    %12 = vector.broadcast %cst_7 : f32 to vector<128x32xf32>
    %13 = arith.cmpf ogt, %5, %12 : vector<128x32xf32>
    %cst_8 = arith.constant 1.000000e+00 : f32
    %14 = vector.broadcast %cst_8 : f32 to vector<128x32xf32>
    %15 = arith.subf %11, %14 : vector<128x32xf32>
    %16 = arith.mulf %5, %15 : vector<128x32xf32>
    %cst_9 = arith.constant 1.000000e+00 : f32
    %17 = vector.broadcast %cst_9 : f32 to vector<128x32xf32>
    %18 = arith.addf %11, %17 : vector<128x32xf32>
    %19 = arith.divf %16, %18 : vector<128x32xf32>
    %20 = arith.select %13, %5, %19 : vector<128x32xi1>, vector<128x32xf32>
    %c0_10 = arith.constant 0 : index
    %c0_11 = arith.constant 0 : index
    %21 = vector.load %arg4[%c0_10, %c0_11] : memref<32x32xf32, #tpu.memory_space<vmem>>, vector<32x32xf32>
    %cst_12 = arith.constant dense<0.000000e+00> : vector<128x32xf32>
    %22 = tpu.matmul %20, %21, %cst_12 {dimension_numbers = #tpu.dot_dimension_numbers<[1], [0], [0], [1], [0, 0, 1, 1], [], []>} : vector<128x32xf32>, vector<32x32xf32>, vector<128x32xf32> -> vector<128x32xf32>
    %c0_13 = arith.constant 0 : index
    %c0_14 = arith.constant 0 : index
    %23 = vector.load %arg5[%c0_13, %c0_14] : memref<1x32xf32, #tpu.memory_space<vmem>>, vector<1x32xf32>
    %24 = vector.broadcast %23 : vector<1x32xf32> to vector<128x32xf32>
    %25 = arith.addf %22, %24 : vector<128x32xf32>
    %c0_15 = arith.constant 0 : index
    %c0_16 = arith.constant 0 : index
    %c0_17 = arith.constant 0 : index
    %26 = vector.load %arg0[%c0_15, %c0_16, %c0_17] : memref<2x128x32xf32, #tpu.memory_space<vmem>>, vector<2x128x32xf32>
    %27 = vector.shape_cast %25 : vector<128x32xf32> to vector<1x128x32xf32>
    %28 = vector.broadcast %27 : vector<1x128x32xf32> to vector<2x128x32xf32>
    %29 = arith.addf %26, %28 : vector<2x128x32xf32>
    %c0_18 = arith.constant 0 : index
    %c0_19 = arith.constant 0 : index
    %c0_20 = arith.constant 0 : index
    %30 = vector.load %arg6[%c0_18, %c0_19, %c0_20] : memref<2x128x32xf32, #tpu.memory_space<vmem>>, vector<2x128x32xf32>
    tpu.vector_store %arg6[%c0_18, %c0_19, %c0_20], %29 {strides = array<i32>} : memref<2x128x32xf32, #tpu.memory_space<vmem>>, vector<2x128x32xf32>,
    return
  }
}

</mosaic_0001>

<llo_original>
// kernel: tpu_custom_call.1
$region0: #{tpu_custom_call.1}
  #allocation0 [shape = 'u32[]', space=smem, size = 0x4, offset = 0x4, fixed_abs, tag = 'smem constant byte address 0x4 - core index']
  #allocation1 [shape = 'u32[72,128]{1,0:T(1,128)}', space=vmem, size = 0x9000, scoped, tag = 'internal scratch']
  %s0 = inlined_call_operand.vmem [shape: f32[2,128,32], index: 0, kind: input, shape index: {}]
  %s1 = inlined_call_operand.vmem [shape: f32[128,32], index: 1, kind: input, shape index: {}]
  %s2 = inlined_call_operand.vmem [shape: f32[32,32], index: 2, kind: input, shape index: {}]
  %s3 = inlined_call_operand.vmem [shape: f32[1,32], index: 3, kind: input, shape index: {}]
  %s4 = inlined_call_operand.vmem [shape: f32[32,32], index: 4, kind: input, shape index: {}]
  %s5 = inlined_call_operand.vmem [shape: f32[1,32], index: 5, kind: input, shape index: {}]
  %s6 = inlined_call_operand.vmem [shape: f32[2,128,32], index: 6, kind: output, shape index: {}]
  %s7 = sld [smem:[#allocation0]]
  $region34: #{tpu_custom_call.1} parent=0
    _
  %s9 = ssub.s32 1, %s7
  %s10 = scalar_select 0, %s9, %s7
  // Predicated region
  $region2: #{tpu_custom_call.1} parent=0 // pred_check
    _
  $region3: #{tpu_custom_call.1} parent=0 // pred_check_branch
    %12 = sbr.rel (0) target = $region5
  $region4: #{tpu_custom_call.1} parent=0 // pred_region
    _
  $region5: #{tpu_custom_call.1} parent=0 // pred_fallthru
    _
  // Predicated region
  $region6: #{tpu_custom_call.1} parent=0 // pred_check
    _
  $region7: #{tpu_custom_call.1} parent=0 // pred_check_branch
    %14 = sbr.rel (0) target = $region9
  $region8: #{tpu_custom_call.1} parent=0 // pred_region
    _
  $region9: #{tpu_custom_call.1} parent=0 // pred_fallthru
    _
  // Predicated region
  $region10: #{tpu_custom_call.1} parent=0 // pred_check
    _
  $region11: #{tpu_custom_call.1} parent=0 // pred_check_branch
    %16 = sbr.rel (0) target = $region13
  $region12: #{tpu_custom_call.1} parent=0 // pred_region
    _
  $region13: #{tpu_custom_call.1} parent=0 // pred_fallthru
    _
  // Predicated region
  $region14: #{tpu_custom_call.1} parent=0 // pred_check
    _
  $region15: #{tpu_custom_call.1} parent=0 // pred_check_branch
    %18 = sbr.rel (0) target = $region17
  $region16: #{tpu_custom_call.1} parent=0 // pred_region
    _
  $region17: #{tpu_custom_call.1} parent=0 // pred_fallthru
    _
  // Predicated region
  $region18: #{tpu_custom_call.1} parent=0 // pred_check
    _
  $region19: #{tpu_custom_call.1} parent=0 // pred_check_branch
    %20 = sbr.rel (0) target = $region21
  $region20: #{tpu_custom_call.1} parent=0 // pred_region
    _
  $region21: #{tpu_custom_call.1} parent=0 // pred_fallthru
    _
  // Predicated region
  $region22: #{tpu_custom_call.1} parent=0 // pred_check
    _
  $region23: #{tpu_custom_call.1} parent=0 // pred_check_branch
    %22 = sbr.rel (0) target = $region25
  $region24: #{tpu_custom_call.1} parent=0 // pred_region
    _
  $region25: #{tpu_custom_call.1} parent=0 // pred_fallthru
    _
  %v23 = vld [vmem:[%s1] sm:$0xff]
  %v24 = vld [vmem:[%s1 + $0x8] sm:$0xff]
  %v25 = vld [vmem:[%s1 + $0x10] sm:$0xff]
  %v26 = vld [vmem:[%s1 + $0x18] sm:$0xff]
  %v27 = vld [vmem:[%s1 + $0x20] sm:$0xff]
  %v28 = vld [vmem:[%s1 + $0x28] sm:$0xff]
  %v29 = vld [vmem:[%s1 + $0x30] sm:$0xff]
  %v30 = vld [vmem:[%s1 + $0x38] sm:$0xff]
  %v31 = vld [vmem:[%s1 + $0x40] sm:$0xff]
  %v32 = vld [vmem:[%s1 + $0x48] sm:$0xff]
  %v33 = vld [vmem:[%s1 + $0x50] sm:$0xff]
  %v34 = vld [vmem:[%s1 + $0x58] sm:$0xff]
  %v35 = vld [vmem:[%s1 + $0x60] sm:$0xff]
  %v36 = vld [vmem:[%s1 + $0x68] sm:$0xff]
  %v37 = vld [vmem:[%s1 + $0x70] sm:$0xff]
  %v38 = vld [vmem:[%s1 + $0x78] sm:$0xff]
  %v39 = vld [vmem:[%s2] sm:$0xff]
  %v40 = vld [vmem:[%s2 + $0x8] sm:$0xff]
  %v41 = vld [vmem:[%s2 + $0x10] sm:$0xff]
  %v42 = vld [vmem:[%s2 + $0x18] sm:$0xff]
  %v43 = vld [vmem:[%s3] sm:$0x1]
  %v45 = vperm.slane %v43, 0
  %vm47 = vcmask 261120
  %v49 = vsel %vm47, %v23, 0
  %v52 = vsel %vm47, %v24, 0
  %v55 = vsel %vm47, %v25, 0
  %v58 = vsel %vm47, %v26, 0
  %v61 = vsel %vm47, %v27, 0
  %v64 = vsel %vm47, %v28, 0
  %v67 = vsel %vm47, %v29, 0
  %v70 = vsel %vm47, %v30, 0
  %v73 = vsel %vm47, %v31, 0
  %v76 = vsel %vm47, %v32, 0
  %v79 = vsel %vm47, %v33, 0
  %v82 = vsel %vm47, %v34, 0
  %v85 = vsel %vm47, %v35, 0
  %v88 = vsel %vm47, %v36, 0
  %v91 = vsel %vm47, %v37, 0
  %v94 = vsel %vm47, %v38, 0
  %96 = vmatpush.msra.mxu0 0.0
  %97 = vmatpush.msra.mxu0 0.0
  %98 = vmatpush.msra.mxu0 0.0
  %99 = vmatpush.msra.mxu0 0.0
  %100 = vmatpush.msra.mxu0 0.0
  %101 = vmatpush.msra.mxu0 0.0
  %102 = vmatpush.msra.mxu0 0.0
  %103 = vmatpush.msra.mxu0 0.0
  %104 = vmatpush.msra.mxu0 0.0
  %105 = vmatpush.msra.mxu0 0.0
  %106 = vmatpush.msra.mxu0 0.0
  %107 = vmatpush.msra.mxu0 0.0
  %108 = vmatpush.msra.mxu0 %v42
  %109 = vmatpush.msra.mxu0 %v41
  %110 = vmatpush.msra.mxu0 %v40
  %111 = vmatpush.msra.mxu0 %v39
  %112 = vmatmul.f32.gmra.mxu0 %v49
  %v113 = vpop.f32.mrf.mxu0
  %v114 = vadd.f32 %v45, %v113
  %115 = vmatmul.f32.gmra.mxu0 %v52
  %v116 = vpop.f32.mrf.mxu0
  %v117 = vadd.f32 %v45, %v116
  %118 = vmatmul.f32.gmra.mxu0 %v55
  %v119 = vpop.f32.mrf.mxu0
  %v120 = vadd.f32 %v45, %v119
  %121 = vmatmul.f32.gmra.mxu0 %v58
  %v122 = vpop.f32.mrf.mxu0
  %v123 = vadd.f32 %v45, %v122
  %124 = vmatmul.f32.gmra.mxu0 %v61
  %v125 = vpop.f32.mrf.mxu0
  %v126 = vadd.f32 %v45, %v125
  %127 = vmatmul.f32.gmra.mxu0 %v64
  %v128 = vpop.f32.mrf.mxu0
  %v129 = vadd.f32 %v45, %v128
  %130 = vmatmul.f32.gmra.mxu0 %v67
  %v131 = vpop.f32.mrf.mxu0
  %v132 = vadd.f32 %v45, %v131
  %133 = vmatmul.f32.gmra.mxu0 %v70
  %v134 = vpop.f32.mrf.mxu0
  %v135 = vadd.f32 %v45, %v134
  %136 = vmatmul.f32.gmra.mxu0 %v73
  %v137 = vpop.f32.mrf.mxu0
  %v138 = vadd.f32 %v45, %v137
  %139 = vmatmul.f32.gmra.mxu0 %v76
  %v140 = vpop.f32.mrf.mxu0
  %v141 = vadd.f32 %v45, %v140
  %142 = vmatmul.f32.gmra.mxu0 %v79
  %v143 = vpop.f32.mrf.mxu0
  %v144 = vadd.f32 %v45, %v143
  %145 = vmatmul.f32.gmra.mxu0 %v82
  %v146 = vpop.f32.mrf.mxu0
  %v147 = vadd.f32 %v45, %v146
  %148 = vmatmul.f32.gmra.mxu0 %v85
  %v149 = vpop.f32.mrf.mxu0
  %v150 = vadd.f32 %v45, %v149
  %151 = vmatmul.f32.gmra.mxu0 %v88
  %v152 = vpop.f32.mrf.mxu0
  %v153 = vadd.f32 %v45, %v152
  %154 = vmatmul.f32.gmra.mxu0 %v91
  %v155 = vpop.f32.mrf.mxu0
  %v156 = vadd.f32 %v45, %v155
  %157 = vmatmul.f32.gmra.mxu0 %v94
  %v158 = vpop.f32.mrf.mxu0
  %v159 = vadd.f32 %v45, %v158
  %160 = vdwg.mxu0
  %v161 = vmin.f32 %v114, 20.0
  %v162 = vmin.f32 %v117, 20.0
  %v163 = vmin.f32 %v120, 20.0
  %v164 = vmin.f32 %v123, 20.0
  %v165 = vmin.f32 %v126, 20.0
  %v166 = vmin.f32 %v129, 20.0
  %v167 = vmin.f32 %v132, 20.0
  %v168 = vmin.f32 %v135, 20.0
  %v169 = vmin.f32 %v138, 20.0
  %v170 = vmin.f32 %v141, 20.0
  %v171 = vmin.f32 %v144, 20.0
  %v172 = vmin.f32 %v147, 20.0
  %v173 = vmin.f32 %v150, 20.0
  %v174 = vmin.f32 %v153, 20.0
  %v175 = vmin.f32 %v156, 20.0
  %v176 = vmin.f32 %v159, 20.0
  %v177 = vmul.f32 %v161, 1.442695
  %v178 = vpow.pop %v177
  %v179 = vmul.f32 %v162, 1.442695
  %v180 = vpow.pop %v179
  %v181 = vmul.f32 %v163, 1.442695
  %v182 = vpow.pop %v181
  %v183 = vmul.f32 %v164, 1.442695
  %v184 = vpow.pop %v183
  %v185 = vmul.f32 %v165, 1.442695
  %v186 = vpow.pop %v185
  %v187 = vmul.f32 %v166, 1.442695
  %v188 = vpow.pop %v187
  %v189 = vmul.f32 %v167, 1.442695
  %v190 = vpow.pop %v189
  %v191 = vmul.f32 %v168, 1.442695
  %v192 = vpow.pop %v191
  %v193 = vmul.f32 %v169, 1.442695
  %v194 = vpow.pop %v193
  %v195 = vmul.f32 %v170, 1.442695
  %v196 = vpow.pop %v195
  %v197 = vmul.f32 %v171, 1.442695
  %v198 = vpow.pop %v197
  %v199 = vmul.f32 %v172, 1.442695
  %v200 = vpow.pop %v199
  %v201 = vmul.f32 %v173, 1.442695
  %v202 = vpow.pop %v201
  %v203 = vmul.f32 %v174, 1.442695
  %v204 = vpow.pop %v203
  %v205 = vmul.f32 %v175, 1.442695
  %v206 = vpow.pop %v205
  %v207 = vmul.f32 %v176, 1.442695
  %v208 = vpow.pop %v207
  %v209 = vadd.f32 %v178, 1.0
  %v210 = vadd.f32 %v180, 1.0
  %v211 = vadd.f32 %v182, 1.0
  %v212 = vadd.f32 %v184, 1.0
  %v213 = vadd.f32 %v186, 1.0
  %v214 = vadd.f32 %v188, 1.0
  %v215 = vadd.f32 %v190, 1.0
  %v216 = vadd.f32 %v192, 1.0
  %v217 = vadd.f32 %v194, 1.0
  %v218 = vadd.f32 %v196, 1.0
  %v219 = vadd.f32 %v198, 1.0
  %v220 = vadd.f32 %v200, 1.0
  %v221 = vadd.f32 %v202, 1.0
  %v222 = vadd.f32 %v204, 1.0
  %v223 = vadd.f32 %v206, 1.0
  %v224 = vadd.f32 %v208, 1.0
  %v225 = vmul.f32 %v209, %v209
  %v226 = vmul.f32 %v210, %v210
  %v227 = vmul.f32 %v211, %v211
  %v228 = vmul.f32 %v212, %v212
  %v229 = vmul.f32 %v213, %v213
  %v230 = vmul.f32 %v214, %v214
  %v231 = vmul.f32 %v215, %v215
  %v232 = vmul.f32 %v216, %v216
  %v233 = vmul.f32 %v217, %v217
  %v234 = vmul.f32 %v218, %v218
  %v235 = vmul.f32 %v219, %v219
  %v236 = vmul.f32 %v220, %v220
  %v237 = vmul.f32 %v221, %v221
  %v238 = vmul.f32 %v222, %v222
  %v239 = vmul.f32 %v223, %v223
  %v240 = vmul.f32 %v224, %v224
  %vm241 = vcmp.gt.f32.partialorder %v114, 20.0
  %vm242 = vcmp.gt.f32.partialorder %v117, 20.0
  %vm243 = vcmp.gt.f32.partialorder %v120, 20.0
  %vm244 = vcmp.gt.f32.partialorder %v123, 20.0
  %vm245 = vcmp.gt.f32.partialorder %v126, 20.0
  %vm246 = vcmp.gt.f32.partialorder %v129, 20.0
  %vm247 = vcmp.gt.f32.partialorder %v132, 20.0
  %vm248 = vcmp.gt.f32.partialorder %v135, 20.0
  %vm249 = vcmp.gt.f32.partialorder %v138, 20.0
  %vm250 = vcmp.gt.f32.partialorder %v141, 20.0
  %vm251 = vcmp.gt.f32.partialorder %v144, 20.0
  %vm252 = vcmp.gt.f32.partialorder %v147, 20.0
  %vm253 = vcmp.gt.f32.partialorder %v150, 20.0
  %vm254 = vcmp.gt.f32.partialorder %v153, 20.0
  %vm255 = vcmp.gt.f32.partialorder %v156, 20.0
  %vm256 = vcmp.gt.f32.partialorder %v159, 20.0
  %v257 = vsub.f32 %v225, 1.0
  %v258 = vsub.f32 %v226, 1.0
  %v259 = vsub.f32 %v227, 1.0
  %v260 = vsub.f32 %v228, 1.0
  %v261 = vsub.f32 %v229, 1.0
  %v262 = vsub.f32 %v230, 1.0
  %v263 = vsub.f32 %v231, 1.0
  %v264 = vsub.f32 %v232, 1.0
  %v265 = vsub.f32 %v233, 1.0
  %v266 = vsub.f32 %v234, 1.0
  %v267 = vsub.f32 %v235, 1.0
  %v268 = vsub.f32 %v236, 1.0
  %v269 = vsub.f32 %v237, 1.0
  %v270 = vsub.f32 %v238, 1.0
  %v271 = vsub.f32 %v239, 1.0
  %v272 = vsub.f32 %v240, 1.0
  %v273 = vmul.f32 %v114, %v257
  %v274 = vmul.f32 %v117, %v258
  %v275 = vmul.f32 %v120, %v259
  %v276 = vmul.f32 %v123, %v260
  %v277 = vmul.f32 %v126, %v261
  %v278 = vmul.f32 %v129, %v262
  %v279 = vmul.f32 %v132, %v263
  %v280 = vmul.f32 %v135, %v264
  %v281 = vmul.f32 %v138, %v265
  %v282 = vmul.f32 %v141, %v266
  %v283 = vmul.f32 %v144, %v267
  %v284 = vmul.f32 %v147, %v268
  %v285 = vmul.f32 %v150, %v269
  %v286 = vmul.f32 %v153, %v270
  %v287 = vmul.f32 %v156, %v271
  %v288 = vmul.f32 %v159, %v272
  %v289 = vadd.f32 %v225, 1.0
  %v290 = vadd.f32 %v226, 1.0
  %v291 = vadd.f32 %v227, 1.0
  %v292 = vadd.f32 %v228, 1.0
  %v293 = vadd.f32 %v229, 1.0
  %v294 = vadd.f32 %v230, 1.0
  %v295 = vadd.f32 %v231, 1.0
  %v296 = vadd.f32 %v232, 1.0
  %v297 = vadd.f32 %v233, 1.0
  %v298 = vadd.f32 %v234, 1.0
  %v299 = vadd.f32 %v235, 1.0
  %v300 = vadd.f32 %v236, 1.0
  %v301 = vadd.f32 %v237, 1.0
  %v302 = vadd.f32 %v238, 1.0
  %v303 = vadd.f32 %v239, 1.0
  %v304 = vadd.f32 %v240, 1.0
  %v305 = vrcp.pop %v289
  %v306 = vmul.f32 %v289, %v305
  %v307 = vsub.f32 1.0, %v306
  %v308 = vmul.f32 %v305, %v307
  %v309 = vadd.f32 %v305, %v308
  %vm310 = vweird.f32 %v289
  %vm311 = vweird.f32 %v305
  %vm312 = vmor %vm310, %vm311
  %v313 = vsel %vm312, %v305, %v309
  %v314 = vand.u32 2147483647, %v289
  %vm315 = vcmp.eq.f32.partialorder %v314, 8.507059e+37
  %v316 = vand.u32 %v289, 2147483648
  %v317 = vor.u32 1.1754944e-38, %v316
  %v318 = vsel %vm315, %v317, %v313
  %v319 = vmul.f32 %v273, %v318
  %v320 = vrcp.pop %v290
  %v321 = vmul.f32 %v290, %v320
  %v322 = vsub.f32 1.0, %v321
  %v323 = vmul.f32 %v320, %v322
  %v324 = vadd.f32 %v320, %v323
  %vm325 = vweird.f32 %v290
  %vm326 = vweird.f32 %v320
  %vm327 = vmor %vm325, %vm326
  %v328 = vsel %vm327, %v320, %v324
  %v329 = vand.u32 2147483647, %v290
  %vm330 = vcmp.eq.f32.partialorder %v329, 8.507059e+37
  %v331 = vand.u32 %v290, 2147483648
  %v332 = vor.u32 1.1754944e-38, %v331
  %v333 = vsel %vm330, %v332, %v328
  %v334 = vmul.f32 %v274, %v333
  %v335 = vrcp.pop %v291
  %v336 = vmul.f32 %v291, %v335
  %v337 = vsub.f32 1.0, %v336
  %v338 = vmul.f32 %v335, %v337
  %v339 = vadd.f32 %v335, %v338
  %vm340 = vweird.f32 %v291
  %vm341 = vweird.f32 %v335
  %vm342 = vmor %vm340, %vm341
  %v343 = vsel %vm342, %v335, %v339
  %v344 = vand.u32 2147483647, %v291
  %vm345 = vcmp.eq.f32.partialorder %v344, 8.507059e+37
  %v346 = vand.u32 %v291, 2147483648
  %v347 = vor.u32 1.1754944e-38, %v346
  %v348 = vsel %vm345, %v347, %v343
  %v349 = vmul.f32 %v275, %v348
  %v350 = vrcp.pop %v292
  %v351 = vmul.f32 %v292, %v350
  %v352 = vsub.f32 1.0, %v351
  %v353 = vmul.f32 %v350, %v352
  %v354 = vadd.f32 %v350, %v353
  %vm355 = vweird.f32 %v292
  %vm356 = vweird.f32 %v350
  %vm357 = vmor %vm355, %vm356
  %v358 = vsel %vm357, %v350, %v354
  %v359 = vand.u32 2147483647, %v292
  %vm360 = vcmp.eq.f32.partialorder %v359, 8.507059e+37
  %v361 = vand.u32 %v292, 2147483648
  %v362 = vor.u32 1.1754944e-38, %v361
  %v363 = vsel %vm360, %v362, %v358
  %v364 = vmul.f32 %v276, %v363
  %v365 = vrcp.pop %v293
  %v366 = vmul.f32 %v293, %v365
  %v367 = vsub.f32 1.0, %v366
  %v368 = vmul.f32 %v365, %v367
  %v369 = vadd.f32 %v365, %v368
  %vm370 = vweird.f32 %v293
  %vm371 = vweird.f32 %v365
  %vm372 = vmor %vm370, %vm371
  %v373 = vsel %vm372, %v365, %v369
  %v374 = vand.u32 2147483647, %v293
  %vm375 = vcmp.eq.f32.partialorder %v374, 8.507059e+37
  %v376 = vand.u32 %v293, 2147483648
  %v377 = vor.u32 1.1754944e-38, %v376
  %v378 = vsel %vm375, %v377, %v373
  %v379 = vmul.f32 %v277, %v378
  %v380 = vrcp.pop %v294
  %v381 = vmul.f32 %v294, %v380
  %v382 = vsub.f32 1.0, %v381
  %v383 = vmul.f32 %v380, %v382
  %v384 = vadd.f32 %v380, %v383
  %vm385 = vweird.f32 %v294
  %vm386 = vweird.f32 %v380
  %vm387 = vmor %vm385, %vm386
  %v388 = vsel %vm387, %v380, %v384
  %v389 = vand.u32 2147483647, %v294
  %vm390 = vcmp.eq.f32.partialorder %v389, 8.507059e+37
  %v391 = vand.u32 %v294, 2147483648
  %v392 = vor.u32 1.1754944e-38, %v391
  %v393 = vsel %vm390, %v392, %v388
  %v394 = vmul.f32 %v278, %v393
  %v395 = vrcp.pop %v295
  %v396 = vmul.f32 %v295, %v395
  %v397 = vsub.f32 1.0, %v396
  %v398 = vmul.f32 %v395, %v397
  %v399 = vadd.f32 %v395, %v398
  %vm400 = vweird.f32 %v295
  %vm401 = vweird.f32 %v395
  %vm402 = vmor %vm400, %vm401
  %v403 = vsel %vm402, %v395, %v399
  %v404 = vand.u32 2147483647, %v295
  %vm405 = vcmp.eq.f32.partialorder %v404, 8.507059e+37
  %v406 = vand.u32 %v295, 2147483648
  %v407 = vor.u32 1.1754944e-38, %v406
  %v408 = vsel %vm405, %v407, %v403
  %v409 = vmul.f32 %v279, %v408
  %v410 = vrcp.pop %v296
  %v411 = vmul.f32 %v296, %v410
  %v412 = vsub.f32 1.0, %v411
  %v413 = vmul.f32 %v410, %v412
  %v414 = vadd.f32 %v410, %v413
  %vm415 = vweird.f32 %v296
  %vm416 = vweird.f32 %v410
  %vm417 = vmor %vm415, %vm416
  %v418 = vsel %vm417, %v410, %v414
  %v419 = vand.u32 2147483647, %v296
  %vm420 = vcmp.eq.f32.partialorder %v419, 8.507059e+37
  %v421 = vand.u32 %v296, 2147483648
  %v422 = vor.u32 1.1754944e-38, %v421
  %v423 = vsel %vm420, %v422, %v418
  %v424 = vmul.f32 %v280, %v423
  %v425 = vrcp.pop %v297
  %v426 = vmul.f32 %v297, %v425
  %v427 = vsub.f32 1.0, %v426
  %v428 = vmul.f32 %v425, %v427
  %v429 = vadd.f32 %v425, %v428
  %vm430 = vweird.f32 %v297
  %vm431 = vweird.f32 %v425
  %vm432 = vmor %vm430, %vm431
  %v433 = vsel %vm432, %v425, %v429
  %v434 = vand.u32 2147483647, %v297
  %vm435 = vcmp.eq.f32.partialorder %v434, 8.507059e+37
  %v436 = vand.u32 %v297, 2147483648
  %v437 = vor.u32 1.1754944e-38, %v436
  %v438 = vsel %vm435, %v437, %v433
  %v439 = vmul.f32 %v281, %v438
  %v440 = vrcp.pop %v298
  %v441 = vmul.f32 %v298, %v440
  %v442 = vsub.f32 1.0, %v441
  %v443 = vmul.f32 %v440, %v442
  %v444 = vadd.f32 %v440, %v443
  %vm445 = vweird.f32 %v298
  %vm446 = vweird.f32 %v440
  %vm447 = vmor %vm445, %vm446
  %v448 = vsel %vm447, %v440, %v444
  %v449 = vand.u32 2147483647, %v298
  %vm450 = vcmp.eq.f32.partialorder %v449, 8.507059e+37
  %v451 = vand.u32 %v298, 2147483648
  %v452 = vor.u32 1.1754944e-38, %v451
  %v453 = vsel %vm450, %v452, %v448
  %v454 = vmul.f32 %v282, %v453
  %v455 = vrcp.pop %v299
  %v456 = vmul.f32 %v299, %v455
  %v457 = vsub.f32 1.0, %v456
  %v458 = vmul.f32 %v455, %v457
  %v459 = vadd.f32 %v455, %v458
  %vm460 = vweird.f32 %v299
  %vm461 = vweird.f32 %v455
  %vm462 = vmor %vm460, %vm461
  %v463 = vsel %vm462, %v455, %v459
  %v464 = vand.u32 2147483647, %v299
  %vm465 = vcmp.eq.f32.partialorder %v464, 8.507059e+37
  %v466 = vand.u32 %v299, 2147483648
  %v467 = vor.u32 1.1754944e-38, %v466
  %v468 = vsel %vm465, %v467, %v463
  %v469 = vmul.f32 %v283, %v468
  %v470 = vrcp.pop %v300
  %v471 = vmul.f32 %v300, %v470
  %v472 = vsub.f32 1.0, %v471
  %v473 = vmul.f32 %v470, %v472
  %v474 = vadd.f32 %v470, %v473
  %vm475 = vweird.f32 %v300
  %vm476 = vweird.f32 %v470
  %vm477 = vmor %vm475, %vm476
  %v478 = vsel %vm477, %v470, %v474
  %v479 = vand.u32 2147483647, %v300
  %vm480 = vcmp.eq.f32.partialorder %v479, 8.507059e+37
  %v481 = vand.u32 %v300, 2147483648
  %v482 = vor.u32 1.1754944e-38, %v481
  %v483 = vsel %vm480, %v482, %v478
  %v484 = vmul.f32 %v284, %v483
  %v485 = vrcp.pop %v301
  %v486 = vmul.f32 %v301, %v485
  %v487 = vsub.f32 1.0, %v486
  %v488 = vmul.f32 %v485, %v487
  %v489 = vadd.f32 %v485, %v488
  %vm490 = vweird.f32 %v301
  %vm491 = vweird.f32 %v485
  %vm492 = vmor %vm490, %vm491
  %v493 = vsel %vm492, %v485, %v489
  %v494 = vand.u32 2147483647, %v301
  %vm495 = vcmp.eq.f32.partialorder %v494, 8.507059e+37
  %v496 = vand.u32 %v301, 2147483648
  %v497 = vor.u32 1.1754944e-38, %v496
  %v498 = vsel %vm495, %v497, %v493
  %v499 = vmul.f32 %v285, %v498
  %v500 = vrcp.pop %v302
  %v501 = vmul.f32 %v302, %v500
  %v502 = vsub.f32 1.0, %v501
  %v503 = vmul.f32 %v500, %v502
  %v504 = vadd.f32 %v500, %v503
  %vm505 = vweird.f32 %v302
  %vm506 = vweird.f32 %v500
  %vm507 = vmor %vm505, %vm506
  %v508 = vsel %vm507, %v500, %v504
  %v509 = vand.u32 2147483647, %v302
  %vm510 = vcmp.eq.f32.partialorder %v509, 8.507059e+37
  %v511 = vand.u32 %v302, 2147483648
  %v512 = vor.u32 1.1754944e-38, %v511
  %v513 = vsel %vm510, %v512, %v508
  %v514 = vmul.f32 %v286, %v513
  %v515 = vrcp.pop %v303
  %v516 = vmul.f32 %v303, %v515
  %v517 = vsub.f32 1.0, %v516
  %v518 = vmul.f32 %v515, %v517
  %v519 = vadd.f32 %v515, %v518
  %vm520 = vweird.f32 %v303
  %vm521 = vweird.f32 %v515
  %vm522 = vmor %vm520, %vm521
  %v523 = vsel %vm522, %v515, %v519
  %v524 = vand.u32 2147483647, %v303
  %vm525 = vcmp.eq.f32.partialorder %v524, 8.507059e+37
  %v526 = vand.u32 %v303, 2147483648
  %v527 = vor.u32 1.1754944e-38, %v526
  %v528 = vsel %vm525, %v527, %v523
  %v529 = vmul.f32 %v287, %v528
  %v530 = vrcp.pop %v304
  %v531 = vmul.f32 %v304, %v530
  %v532 = vsub.f32 1.0, %v531
  %v533 = vmul.f32 %v530, %v532
  %v534 = vadd.f32 %v530, %v533
  %vm535 = vweird.f32 %v304
  %vm536 = vweird.f32 %v530
  %vm537 = vmor %vm535, %vm536
  %v538 = vsel %vm537, %v530, %v534
  %v539 = vand.u32 2147483647, %v304
  %vm540 = vcmp.eq.f32.partialorder %v539, 8.507059e+37
  %v541 = vand.u32 %v304, 2147483648
  %v542 = vor.u32 1.1754944e-38, %v541
  %v543 = vsel %vm540, %v542, %v538
  %v544 = vmul.f32 %v288, %v543
  %v545 = vsel %vm241, %v114, %v319
  %v546 = vsel %vm242, %v117, %v334
  %v547 = vsel %vm243, %v120, %v349
  %v548 = vsel %vm244, %v123, %v364
  %v549 = vsel %vm245, %v126, %v379
  %v550 = vsel %vm246, %v129, %v394
  %v551 = vsel %vm247, %v132, %v409
  %v552 = vsel %vm248, %v135, %v424
  %v553 = vsel %vm249, %v138, %v439
  %v554 = vsel %vm250, %v141, %v454
  %v555 = vsel %vm251, %v144, %v469
  %v556 = vsel %vm252, %v147, %v484
  %v557 = vsel %vm253, %v150, %v499
  %v558 = vsel %vm254, %v153, %v514
  %v559 = vsel %vm255, %v156, %v529
  %v560 = vsel %vm256, %v159, %v544
  %v561 = vld [vmem:[%s4] sm:$0xff]
  %v562 = vld [vmem:[%s4 + $0x8] sm:$0xff]
  %v563 = vld [vmem:[%s4 + $0x10] sm:$0xff]
  %v564 = vld [vmem:[%s4 + $0x18] sm:$0xff]
  %v565 = vld [vmem:[%s5] sm:$0x1]
  %v567 = vperm.slane %v565, 0
  %v570 = vsel %vm47, %v545, 0
  %v573 = vsel %vm47, %v546, 0
  %v576 = vsel %vm47, %v547, 0
  %v579 = vsel %vm47, %v548, 0
  %v582 = vsel %vm47, %v549, 0
  %v585 = vsel %vm47, %v550, 0
  %v588 = vsel %vm47, %v551, 0
  %v591 = vsel %vm47, %v552, 0
  %v594 = vsel %vm47, %v553, 0
  %v597 = vsel %vm47, %v554, 0
  %v600 = vsel %vm47, %v555, 0
  %v603 = vsel %vm47, %v556, 0
  %v606 = vsel %vm47, %v557, 0
  %v609 = vsel %vm47, %v558, 0
  %v612 = vsel %vm47, %v559, 0
  %v615 = vsel %vm47, %v560, 0
  %617 = vmatpush.msra.mxu0 0.0
  %618 = vmatpush.msra.mxu0 0.0
  %619 = vmatpush.msra.mxu0 0.0
  %620 = vmatpush.msra.mxu0 0.0
  %621 = vmatpush.msra.mxu0 0.0
  %622 = vmatpush.msra.mxu0 0.0
  %623 = vmatpush.msra.mxu0 0.0
  %624 = vmatpush.msra.mxu0 0.0
  %625 = vmatpush.msra.mxu0 0.0
  %626 = vmatpush.msra.mxu0 0.0
  %627 = vmatpush.msra.mxu0 0.0
  %628 = vmatpush.msra.mxu0 0.0
  %629 = vmatpush.msra.mxu0 %v564
  %630 = vmatpush.msra.mxu0 %v563
  %631 = vmatpush.msra.mxu0 %v562
  %632 = vmatpush.msra.mxu0 %v561
  %633 = vmatmul.f32.gmra.mxu0 %v570
  %v634 = vpop.f32.mrf.mxu0
  %v635 = vadd.f32 %v567, %v634
  %636 = vmatmul.f32.gmra.mxu0 %v573
  %v637 = vpop.f32.mrf.mxu0
  %v638 = vadd.f32 %v567, %v637
  %639 = vmatmul.f32.gmra.mxu0 %v576
  %v640 = vpop.f32.mrf.mxu0
  %v641 = vadd.f32 %v567, %v640
  %642 = vmatmul.f32.gmra.mxu0 %v579
  %v643 = vpop.f32.mrf.mxu0
  %v644 = vadd.f32 %v567, %v643
  %645 = vmatmul.f32.gmra.mxu0 %v582
  %v646 = vpop.f32.mrf.mxu0
  %v647 = vadd.f32 %v567, %v646
  %648 = vmatmul.f32.gmra.mxu0 %v585
  %v649 = vpop.f32.mrf.mxu0
  %v650 = vadd.f32 %v567, %v649
  %651 = vmatmul.f32.gmra.mxu0 %v588
  %v652 = vpop.f32.mrf.mxu0
  %v653 = vadd.f32 %v567, %v652
  %654 = vmatmul.f32.gmra.mxu0 %v591
  %v655 = vpop.f32.mrf.mxu0
  %v656 = vadd.f32 %v567, %v655
  %657 = vmatmul.f32.gmra.mxu0 %v594
  %v658 = vpop.f32.mrf.mxu0
  %v659 = vadd.f32 %v567, %v658
  %660 = vmatmul.f32.gmra.mxu0 %v597
  %v661 = vpop.f32.mrf.mxu0
  %v662 = vadd.f32 %v567, %v661
  %663 = vmatmul.f32.gmra.mxu0 %v600
  %v664 = vpop.f32.mrf.mxu0
  %v665 = vadd.f32 %v567, %v664
  %666 = vmatmul.f32.gmra.mxu0 %v603
  %v667 = vpop.f32.mrf.mxu0
  %v668 = vadd.f32 %v567, %v667
  %669 = vmatmul.f32.gmra.mxu0 %v606
  %v670 = vpop.f32.mrf.mxu0
  %v671 = vadd.f32 %v567, %v670
  %672 = vmatmul.f32.gmra.mxu0 %v609
  %v673 = vpop.f32.mrf.mxu0
  %v674 = vadd.f32 %v567, %v673
  %675 = vmatmul.f32.gmra.mxu0 %v612
  %v676 = vpop.f32.mrf.mxu0
  %v677 = vadd.f32 %v567, %v676
  %678 = vmatmul.f32.gmra.mxu0 %v615
  %v679 = vpop.f32.mrf.mxu0
  %v680 = vadd.f32 %v567, %v679
  %681 = vdwg.mxu0
  %v682 = vld [vmem:[%s0] sm:$0xff]
  %v683 = vld [vmem:[%s0 + $0x8] sm:$0xff]
  %v684 = vld [vmem:[%s0 + $0x10] sm:$0xff]
  %v685 = vld [vmem:[%s0 + $0x18] sm:$0xff]
  %v686 = vld [vmem:[%s0 + $0x20] sm:$0xff]
  %v687 = vld [vmem:[%s0 + $0x28] sm:$0xff]
  %v688 = vld [vmem:[%s0 + $0x30] sm:$0xff]
  %v689 = vld [vmem:[%s0 + $0x38] sm:$0xff]
  %v690 = vld [vmem:[%s0 + $0x40] sm:$0xff]
  %v691 = vld [vmem:[%s0 + $0x48] sm:$0xff]
  %v692 = vld [vmem:[%s0 + $0x50] sm:$0xff]
  %v693 = vld [vmem:[%s0 + $0x58] sm:$0xff]
  %v694 = vld [vmem:[%s0 + $0x60] sm:$0xff]
  %v695 = vld [vmem:[%s0 + $0x68] sm:$0xff]
  %v696 = vld [vmem:[%s0 + $0x70] sm:$0xff]
  %v697 = vld [vmem:[%s0 + $0x78] sm:$0xff]
  %v698 = vld [vmem:[%s0 + $0x80] sm:$0xff]
  %v699 = vld [vmem:[%s0 + $0x88] sm:$0xff]
  %v700 = vld [vmem:[%s0 + $0x90] sm:$0xff]
  %v701 = vld [vmem:[%s0 + $0x98] sm:$0xff]
  %v702 = vld [vmem:[%s0 + $0xa0] sm:$0xff]
  %v703 = vld [vmem:[%s0 + $0xa8] sm:$0xff]
  %v704 = vld [vmem:[%s0 + $0xb0] sm:$0xff]
  %v705 = vld [vmem:[%s0 + $0xb8] sm:$0xff]
  %v706 = vld [vmem:[%s0 + $0xc0] sm:$0xff]
  %v707 = vld [vmem:[%s0 + $0xc8] sm:$0xff]
  %v708 = vld [vmem:[%s0 + $0xd0] sm:$0xff]
  %v709 = vld [vmem:[%s0 + $0xd8] sm:$0xff]
  %v710 = vld [vmem:[%s0 + $0xe0] sm:$0xff]
  %v711 = vld [vmem:[%s0 + $0xe8] sm:$0xff]
  %v712 = vld [vmem:[%s0 + $0xf0] sm:$0xff]
  %v713 = vld [vmem:[%s0 + $0xf8] sm:$0xff]
  %v714 = vadd.f32 %v682, %v635
  %v715 = vadd.f32 %v683, %v638
  %v716 = vadd.f32 %v684, %v641
  %v717 = vadd.f32 %v685, %v644
  %v718 = vadd.f32 %v686, %v647
  %v719 = vadd.f32 %v687, %v650
  %v720 = vadd.f32 %v688, %v653
  %v721 = vadd.f32 %v689, %v656
  %v722 = vadd.f32 %v690, %v659
  %v723 = vadd.f32 %v691, %v662
  %v724 = vadd.f32 %v692, %v665
  %v725 = vadd.f32 %v693, %v668
  %v726 = vadd.f32 %v694, %v671
  %v727 = vadd.f32 %v695, %v674
  %v728 = vadd.f32 %v696, %v677
  %v729 = vadd.f32 %v697, %v680
  %v730 = vadd.f32 %v698, %v635
  %v731 = vadd.f32 %v699, %v638
  %v732 = vadd.f32 %v700, %v641
  %v733 = vadd.f32 %v701, %v644
  %v734 = vadd.f32 %v702, %v647
  %v735 = vadd.f32 %v703, %v650
  %v736 = vadd.f32 %v704, %v653
  %v737 = vadd.f32 %v705, %v656
  %v738 = vadd.f32 %v706, %v659
  %v739 = vadd.f32 %v707, %v662
  %v740 = vadd.f32 %v708, %v665
  %v741 = vadd.f32 %v709, %v668
  %v742 = vadd.f32 %v710, %v671
  %v743 = vadd.f32 %v711, %v674
  %v744 = vadd.f32 %v712, %v677
  %v745 = vadd.f32 %v713, %v680
  %746 = vst.msk [vmem:[%s6] sm:$0xff] %vm47, %v714
  %747 = vst.msk [vmem:[%s6 + $0x8] sm:$0xff] %vm47, %v715
  %748 = vst.msk [vmem:[%s6 + $0x10] sm:$0xff] %vm47, %v716
  %749 = vst.msk [vmem:[%s6 + $0x18] sm:$0xff] %vm47, %v717
  %750 = vst.msk [vmem:[%s6 + $0x20] sm:$0xff] %vm47, %v718
  %751 = vst.msk [vmem:[%s6 + $0x28] sm:$0xff] %vm47, %v719
  %752 = vst.msk [vmem:[%s6 + $0x30] sm:$0xff] %vm47, %v720
  %753 = vst.msk [vmem:[%s6 + $0x38] sm:$0xff] %vm47, %v721
  %754 = vst.msk [vmem:[%s6 + $0x40] sm:$0xff] %vm47, %v722
  %755 = vst.msk [vmem:[%s6 + $0x48] sm:$0xff] %vm47, %v723
  %756 = vst.msk [vmem:[%s6 + $0x50] sm:$0xff] %vm47, %v724
  %757 = vst.msk [vmem:[%s6 + $0x58] sm:$0xff] %vm47, %v725
  %758 = vst.msk [vmem:[%s6 + $0x60] sm:$0xff] %vm47, %v726
  %759 = vst.msk [vmem:[%s6 + $0x68] sm:$0xff] %vm47, %v727
  %760 = vst.msk [vmem:[%s6 + $0x70] sm:$0xff] %vm47, %v728
  %761 = vst.msk [vmem:[%s6 + $0x78] sm:$0xff] %vm47, %v729
  %762 = vst.msk [vmem:[%s6 + $0x80] sm:$0xff] %vm47, %v730
  %763 = vst.msk [vmem:[%s6 + $0x88] sm:$0xff] %vm47, %v731
  %764 = vst.msk [vmem:[%s6 + $0x90] sm:$0xff] %vm47, %v732
  %765 = vst.msk [vmem:[%s6 + $0x98] sm:$0xff] %vm47, %v733
  %766 = vst.msk [vmem:[%s6 + $0xa0] sm:$0xff] %vm47, %v734
  %767 = vst.msk [vmem:[%s6 + $0xa8] sm:$0xff] %vm47, %v735
  %768 = vst.msk [vmem:[%s6 + $0xb0] sm:$0xff] %vm47, %v736
  %769 = vst.msk [vmem:[%s6 + $0xb8] sm:$0xff] %vm47, %v737
  %770 = vst.msk [vmem:[%s6 + $0xc0] sm:$0xff] %vm47, %v738
  %771 = vst.msk [vmem:[%s6 + $0xc8] sm:$0xff] %vm47, %v739
  %772 = vst.msk [vmem:[%s6 + $0xd0] sm:$0xff] %vm47, %v740
  %773 = vst.msk [vmem:[%s6 + $0xd8] sm:$0xff] %vm47, %v741
  %774 = vst.msk [vmem:[%s6 + $0xe0] sm:$0xff] %vm47, %v742
  %775 = vst.msk [vmem:[%s6 + $0xe8] sm:$0xff] %vm47, %v743
  %776 = vst.msk [vmem:[%s6 + $0xf0] sm:$0xff] %vm47, %v744
  %777 = vst.msk [vmem:[%s6 + $0xf8] sm:$0xff] %vm47, %v745
  // Predicated region
  $region26: #{tpu_custom_call.1} parent=0 // pred_check
    _
  $region27: #{tpu_custom_call.1} parent=0 // pred_check_branch
    %779 = sbr.rel (0) target = $region29
  $region28: #{tpu_custom_call.1} parent=0 // pred_region
    _
  $region29: #{tpu_custom_call.1} parent=0 // pred_fallthru
    _
  // Predicated region
  $region30: #{tpu_custom_call.1} parent=0 // pred_check
    _
  $region31: #{tpu_custom_call.1} parent=0 // pred_check_branch
    %781 = sbr.rel (0) target = $region33
  $region32: #{tpu_custom_call.1} parent=0 // pred_region
    _
  $region33: #{tpu_custom_call.1} parent=0 // pred_fallthru
    _

</llo_original>
